<compile_context>
chip_gen: v7x
topology: tpu7x:2x2x1
jax: 0.10.0
libtpu: 0.0.40
codegen_flags: <defaults>
</compile_context>

<pallas_src>
import functools

import jax
import jax.numpy as jnp
import numpy as np
from jax import lax
from jax.experimental import pallas as pl
from jax.experimental.pallas import tpu as pltpu


def _round_up(x, m):
    return (x + m - 1) // m * m


def _proxy_isa_kernel(x_ref, t_ref, w_ref, outlier_ref, inv_eff_ref,
                      cnt_ref, msum_ref, pose_ref, nege_ref, *,
                      num_classes, tb, tc, mrg, alpha):
    ci = pl.program_id(0)          # class-tile axis ("parallel")
    bi = pl.program_id(1)          # batch-tile axis ("arbitrary" reduction)

    # Output blocks double as per-class-tile accumulators (index constant over bi).
    @pl.when(bi == 0)
    def _init():
        cnt_ref[...] = jnp.zeros_like(cnt_ref)
        msum_ref[...] = jnp.zeros_like(msum_ref)
        pose_ref[...] = jnp.zeros_like(pose_ref)
        nege_ref[...] = jnp.zeros_like(nege_ref)

    # cos = inputs @ l2_norm(proxies).T for this (batch tile, class tile).
    # Proxies arrive pre-normalized and pre-transposed -> canonical (M,K)x(K,N).
    cos = lax.dot_general(x_ref[...], w_ref[...],
                          dimension_numbers=(((1,), (0,)), ((), ())),
                          preferred_element_type=jnp.float32)          # (tb, tc) f32

    row0 = pl.multiple_of(bi * tb, 8)
    t = t_ref[pl.ds(row0, tb), :]                                      # (tb, 1) int32
    cls = lax.broadcasted_iota(jnp.int32, (1, tc), 1) + ci * tc        # global class id
    pos = t == cls                                                     # P_one_hot
    valid = jnp.logical_and(t >= 0, cls < num_classes)                 # real row & class
    neg = jnp.logical_and(valid, jnp.logical_not(pos))                 # N_one_hot

    # N_i_mask (mask is identically 1 at positive positions in the no-filter path).
    neg_val = jnp.where(cos < outlier_ref[...], inv_eff_ref[...], 1.0)

    # Single fused exp: pos/neg positions are mutually exclusive.
    arg = alpha * jnp.where(pos, mrg - cos, (cos + mrg) * neg_val)
    e = jnp.exp(arg)
    # TODO(synk): no overflow clamp on exp — matches the reference, which also relies
    # on unit-norm embeddings keeping |cos| bounded.

    def _acc8(v):
        # Collapse only to 8 sublanes per tile (plain VPU vreg adds); the final 8->1
        # cross-sublane collapse is deferred to the XLA epilogue.
        if tb == 8:
            return v
        return jnp.sum(v.reshape(tb // 8, 8, tc), axis=0)

    cnt_ref[...] += _acc8(pos.astype(jnp.float32))
    msum_ref[...] += _acc8(jnp.where(neg, neg_val, 0.0))
    # Kept as two masked exp-sums (not union-sum minus pos-sum): alpha=32 makes the
    # subtraction form prone to catastrophic cancellation.
    pose_ref[...] += _acc8(jnp.where(pos, e, 0.0))
    nege_ref[...] += _acc8(jnp.where(neg, e, 0.0))


def proxy_isa_loss(inputs, targets, proxies, effective_num, learned_sim, *,
                   mrg=0.1, alpha=32.0, k=1.0, lam=0.1,
                   block_rows=256, block_classes=1024, lane=128,
                   matmul_dtype=jnp.float32,
                   vmem_budget_bytes=40 * 1024 * 1024):
    """Forward pass of ProxyISA (enableFilter=False, enableMemory=False)."""
    B, D = inputs.shape
    C, D2 = proxies.shape
    assert D == D2

    # NOTE: lane=256 slightly improves MXU fill on v6e/v7x (2x256^2 MXU); 128 is the
    # safe default that is also right for v5e's 4x128^2 MXU.
    d_pad = _round_up(D, lane)
    tb = _round_up(min(block_rows, B), 8)
    tc = _round_up(min(block_classes, C), lane)
    isz = jnp.dtype(matmul_dtype).itemsize

    def _vmem_estimate(tb_, tc_):
        b_pad_ = _round_up(B, tb_)
        return (d_pad * tc_ * isz            # proxy block, single-buffered
                + 2 * tb_ * d_pad * isz      # input tile, double-buffered
                + b_pad_ * lane * 4          # resident targets (lane-padded (b,1))
                + 2 * 8 * tc_ * 4            # outlierSim + inv_eff
                + 4 * 2 * 8 * tc_ * 4        # 4 output accumulators, double-buffered
                + 8 * tb_ * tc_ * 4)         # live (tb,tc) f32 temporaries (estimate)

    # Cap tile sizes to the VMEM budget (re-derived for v7x's smaller VMEM).
    while (_vmem_estimate(tb, tc) > vmem_budget_bytes
           and (tb > 8 or tc > lane)):
        if tc >= tb and tc > lane:
            tc = max(lane, _round_up(tc // 2, lane))
        elif tb > 8:
            tb = max(8, _round_up(tb // 2, 8))
        else:
            break

    b_pad = _round_up(B, tb)
    c_pad = _round_up(C, tc)
    n_bt = b_pad // tb
    n_ct = c_pad // tc
    vmem_limit = int(min(max(2 * _vmem_estimate(tb, tc), 32 << 20), 64 << 20))

    # ---- one-time precompute in XLA (hoisted out of the kernel) ----
    p32 = proxies.astype(jnp.float32)
    p_n = p32 / jnp.sqrt(jnp.sum(p32 * p32, axis=1, keepdims=True) + 1e-12)
    w = (jnp.zeros((d_pad, c_pad), jnp.float32)
         .at[:D, :C].set(p_n.T).astype(matmul_dtype))                  # (d_pad, c_pad)
    x = (jnp.zeros((b_pad, d_pad), jnp.float32)
         .at[:B, :D].set(inputs.astype(jnp.float32)).astype(matmul_dtype))
    t = jnp.full((b_pad, 1), -1, jnp.int32).at[:B, 0].set(targets.astype(jnp.int32))

    eff = jnp.asarray(effective_num, jnp.float32)
    lsim = jnp.asarray(learned_sim, jnp.float32)
    w_base = 1.0 / (1.0 + jnp.log1p(eff))
    eta = (1.0 + k * (1.0 - lsim)) * w_base + lam
    outlier = jnp.full((1, c_pad), -1e30, jnp.float32).at[0, :C].set(lsim - eta)
    inv_eff = jnp.ones((1, c_pad), jnp.float32).at[0, :C].set(
        1.0 / jnp.maximum(eff, 1.0))

    kernel = functools.partial(_proxy_isa_kernel, num_classes=C, tb=tb, tc=tc,
                               mrg=float(mrg), alpha=float(alpha))

    grid_spec = pltpu.PrefetchScalarGridSpec(
        num_scalar_prefetch=0,
        grid=(n_ct, n_bt),
        in_specs=[
            pl.BlockSpec((tb, d_pad), lambda ci, bi: (bi, 0)),           # inputs tile
            pl.BlockSpec((b_pad, 1), lambda ci, bi: (0, 0),              # targets
                         pipeline_mode=pl.Buffered(1)),
            pl.BlockSpec((d_pad, tc), lambda ci, bi: (0, ci),            # proxies^T
                         pipeline_mode=pl.Buffered(1)),
            pl.BlockSpec((1, tc), lambda ci, bi: (0, ci),                # outlierSim
                         pipeline_mode=pl.Buffered(1)),
            pl.BlockSpec((1, tc), lambda ci, bi: (0, ci),                # 1/max(1,eff)
                         pipeline_mode=pl.Buffered(1)),
        ],
        out_specs=[
            pl.BlockSpec((8, tc), lambda ci, bi: (0, ci)),   # classCnt partials
            pl.BlockSpec((8, tc), lambda ci, bi: (0, ci)),   # neg mask-sum partials
            pl.BlockSpec((8, tc), lambda ci, bi: (0, ci)),   # pos exp-sum partials
            pl.BlockSpec((8, tc), lambda ci, bi: (0, ci)),   # neg exp-sum partials
        ],
    )

    outs = pl.pallas_call(
        kernel,
        out_shape=[jax.ShapeDtypeStruct((8, c_pad), jnp.float32)] * 4,
        grid_spec=grid_spec,
        compiler_params=pltpu.CompilerParams(
            dimension_semantics=("parallel", "arbitrary"),
            vmem_limit_bytes=vmem_limit),
        cost_estimate=pl.CostEstimate(
            flops=int(2 * b_pad * c_pad * d_pad),
            transcendentals=int(b_pad * c_pad),
            bytes_accessed=int(n_ct * b_pad * d_pad * isz + d_pad * c_pad * isz
                               + b_pad * 4 + 2 * c_pad * 4 + 4 * 8 * c_pad * 4)),
    )(x, t, w, outlier, inv_eff)

    cnt8, msum8, pose8, nege8 = outs
    cls_cnt = jnp.sum(cnt8, axis=0)[:C]          # final 8->1 collapse + finalize in XLA
    neg_msum = jnp.sum(msum8, axis=0)[:C]
    pos_esum = jnp.sum(pose8, axis=0)[:C]
    neg_esum = jnp.sum(nege8, axis=0)[:C]

    nc = jnp.float32(B) - cls_cnt                 # true batch size, not padded size
    pos_weight_sum = jnp.sum((cls_cnt > 0).astype(jnp.float32))  # mask==1 at positives
    neg_weight_sum = jnp.sum(jnp.where(nc > 0, neg_msum / jnp.maximum(nc, 1.0), 0.0))
    pos_term = jnp.sum(jnp.log1p(pos_esum))
    neg_term = jnp.sum(jnp.log1p(neg_esum))
    return pos_term / pos_weight_sum + neg_term / neg_weight_sum


def _reference(inputs, targets, proxies, effective_num, learned_sim,
               num_classes, mrg=0.1, alpha=32.0, k=1.0, lam=0.1):
    """Numpy port of ProxyISA.forward (enableFilter/enableMemory = False)."""
    inputs = np.asarray(inputs, np.float64)
    proxies = np.asarray(proxies, np.float64)
    targets = np.asarray(targets)
    eff = np.asarray(effective_num, np.float64)
    lsim = np.asarray(learned_sim, np.float64)
    B = inputs.shape[0]

    P = np.zeros((B, num_classes), np.float64)
    P[np.arange(B), targets] = 1.0
    N = 1.0 - P

    pn = proxies / np.sqrt(np.sum(proxies * proxies, axis=1, keepdims=True) + 1e-12)
    cos = inputs @ pn.T

    class_cnt = P.sum(axis=0)
    w_base = 1.0 / (1.0 + np.log(1.0 + eff))
    eta = (1.0 + k * (1.0 - lsim)) * w_base + lam
    outlier = lsim - eta

    mask = np.ones((B, num_classes), np.float64)
    pos_weight_sum = 0.0
    for i in range(num_classes):
        if class_cnt[i] != 0:
            p_idx = np.nonzero(P[:, i])[0]
            pos_weight_sum += mask[p_idx, i].mean()

    neg_weight_sum = 0.0
    for i in range(num_classes):
        n_idx = np.nonzero(N[:, i])[0]
        if len(n_idx) == 0:
            continue
        n_mask = np.where(cos[n_idx, i] < outlier[i],
                          1.0 / max(1.0, eff[i]), 1.0)
        mask[n_idx, i] = n_mask
        neg_weight_sum += n_mask.mean()

    pos_cos = mrg - cos
    neg_cos = cos + mrg
    pos_term = np.log(1.0 + np.sum(P * np.exp(alpha * pos_cos * mask), axis=0)).sum()
    neg_term = np.log(1.0 + np.sum(N * np.exp(alpha * neg_cos * mask), axis=0)).sum()
    return np.float64(pos_term / pos_weight_sum + neg_term / neg_weight_sum)


if __name__ == "__main__":
    def make_case(key, num_classes, size_embed, batch):
        k1, k2, k3, k4, k5 = jax.random.split(key, 5)
        inputs = jax.random.normal(k1, (batch, size_embed), dtype=jnp.float32)
        inputs = inputs / jnp.linalg.norm(inputs, axis=1, keepdims=True)
        targets = jax.random.randint(k2, (batch,), 0, num_classes, dtype=jnp.int32)
        proxies = jax.random.normal(k3, (num_classes, size_embed), dtype=jnp.float32)
        eff = jax.random.uniform(k4, (num_classes,), jnp.float32, 0.0, 5.0)
        lsim = jax.random.uniform(k5, (num_classes,), jnp.float32, 0.2, 0.9)
        return inputs, targets, proxies, eff, lsim

    key = jax.random.PRNGKey(0)
    ka, kb = jax.random.split(key)

    # Case A: 3 batch tiles (tb=8), 1 class tile, f32 matmul — tight tolerance.
    case_a = make_case(ka, 16, 32, 24)
    loss_a = jax.block_until_ready(
        proxy_isa_loss(*case_a, mrg=0.1, alpha=32.0, k=1.0, lam=0.1, block_rows=8))
    ref_a = _reference(*[np.asarray(v) for v in case_a], num_classes=16)
    np.testing.assert_allclose(np.asarray(loss_a), np.float32(ref_a),
                               rtol=1e-3, atol=1e-3)

    # Case B: 2 class tiles ("parallel" axis) x 3 batch tiles, padded B/C/D, tb=16
    # (exercises the deferred 8-sublane accumulation path).
    case_b = make_case(kb, 160, 48, 40)
    loss_b = jax.block_until_ready(
        proxy_isa_loss(*case_b, block_rows=16, block_classes=128))
    ref_b = _reference(*[np.asarray(v) for v in case_b], num_classes=160)
    np.testing.assert_allclose(np.asarray(loss_b), np.float32(ref_b),
                               rtol=1e-3, atol=1e-3)

    # Case C: bf16 MXU path (review item), sanity-gated at a loose tolerance since
    # alpha=32 amplifies bf16 cos rounding inside exp.
    loss_c = jax.block_until_ready(
        proxy_isa_loss(*case_a, block_rows=8, matmul_dtype=jnp.bfloat16))
    np.testing.assert_allclose(np.asarray(loss_c), np.float32(ref_a),
                               rtol=0.1, atol=0.1)

    print("KERNEL_OK")
</pallas_src>

<mosaic_0001>
module attributes {stable_mosaic.version = 11 : i64} {
  func.func @_proxy_isa_kernel(%arg0: i32, %arg1: i32, %arg2: memref<8x128xf32, #tpu.memory_space<vmem>>, %arg3: memref<24x1xi32, #tpu.memory_space<vmem>>, %arg4: memref<128x128xf32, #tpu.memory_space<vmem>>, %arg5: memref<1x128xf32, #tpu.memory_space<vmem>>, %arg6: memref<1x128xf32, #tpu.memory_space<vmem>>, %arg7: memref<8x128xf32, #tpu.memory_space<vmem>>, %arg8: memref<8x128xf32, #tpu.memory_space<vmem>>, %arg9: memref<8x128xf32, #tpu.memory_space<vmem>>, %arg10: memref<8x128xf32, #tpu.memory_space<vmem>>) attributes {dimension_semantics = [#tpu.dimension_semantics<parallel>, #tpu.dimension_semantics<arbitrary>], iteration_bounds = array<i64: 1, 3>, scalar_prefetch = 0 : i64, scratch_operands = 0 : i64, tpu.core_type = #tpu.core_type<tc>, window_params = [{transform_indices = @transform_0, window_bounds = array<i64: 8, 128>}, {pipeline_mode = #tpu.pipeline_mode<synchronous>, transform_indices = @transform_1, window_bounds = array<i64: 24, 1>}, {pipeline_mode = #tpu.pipeline_mode<synchronous>, transform_indices = @transform_2, window_bounds = array<i64: 128, 128>}, {pipeline_mode = #tpu.pipeline_mode<synchronous>, transform_indices = @transform_3, window_bounds = array<i64: 1, 128>}, {pipeline_mode = #tpu.pipeline_mode<synchronous>, transform_indices = @transform_4, window_bounds = array<i64: 1, 128>}, {transform_indices = @transform_5, window_bounds = array<i64: 8, 128>}, {transform_indices = @transform_6, window_bounds = array<i64: 8, 128>}, {transform_indices = @transform_7, window_bounds = array<i64: 8, 128>}, {transform_indices = @transform_8, window_bounds = array<i64: 8, 128>}]} {
    %c0_i32 = arith.constant 0 : i32
    %0 = arith.cmpi eq, %arg1, %c0_i32 : i32
    %1 = arith.extui %0 : i1 to i32
    %c0_i32_0 = arith.constant 0 : i32
    %2 = arith.cmpi ne, %1, %c0_i32_0 : i32
    scf.if %2 {
      %cst_34 = arith.constant 0.000000e+00 : f32
      %63 = vector.broadcast %cst_34 : f32 to vector<8x128xf32>
      %c0_35 = arith.constant 0 : index
      %c0_36 = arith.constant 0 : index
      %64 = vector.load %arg7[%c0_35, %c0_36] : memref<8x128xf32, #tpu.memory_space<vmem>>, vector<8x128xf32>
      tpu.vector_store %arg7[%c0_35, %c0_36], %63 {strides = array<i32>} : memref<8x128xf32, #tpu.memory_space<vmem>>, vector<8x128xf32>,
      %cst_37 = arith.constant 0.000000e+00 : f32
      %65 = vector.broadcast %cst_37 : f32 to vector<8x128xf32>
      %c0_38 = arith.constant 0 : index
      %c0_39 = arith.constant 0 : index
      %66 = vector.load %arg8[%c0_38, %c0_39] : memref<8x128xf32, #tpu.memory_space<vmem>>, vector<8x128xf32>
      tpu.vector_store %arg8[%c0_38, %c0_39], %65 {strides = array<i32>} : memref<8x128xf32, #tpu.memory_space<vmem>>, vector<8x128xf32>,
      %cst_40 = arith.constant 0.000000e+00 : f32
      %67 = vector.broadcast %cst_40 : f32 to vector<8x128xf32>
      %c0_41 = arith.constant 0 : index
      %c0_42 = arith.constant 0 : index
      %68 = vector.load %arg9[%c0_41, %c0_42] : memref<8x128xf32, #tpu.memory_space<vmem>>, vector<8x128xf32>
      tpu.vector_store %arg9[%c0_41, %c0_42], %67 {strides = array<i32>} : memref<8x128xf32, #tpu.memory_space<vmem>>, vector<8x128xf32>,
      %cst_43 = arith.constant 0.000000e+00 : f32
      %69 = vector.broadcast %cst_43 : f32 to vector<8x128xf32>
      %c0_44 = arith.constant 0 : index
      %c0_45 = arith.constant 0 : index
      %70 = vector.load %arg10[%c0_44, %c0_45] : memref<8x128xf32, #tpu.memory_space<vmem>>, vector<8x128xf32>
      tpu.vector_store %arg10[%c0_44, %c0_45], %69 {strides = array<i32>} : memref<8x128xf32, #tpu.memory_space<vmem>>, vector<8x128xf32>,
    } else {
    }
    %c0 = arith.constant 0 : index
    %c0_1 = arith.constant 0 : index
    %3 = vector.load %arg2[%c0, %c0_1] : memref<8x128xf32, #tpu.memory_space<vmem>>, vector<8x128xf32>
    %c0_2 = arith.constant 0 : index
    %c0_3 = arith.constant 0 : index
    %4 = vector.load %arg4[%c0_2, %c0_3] : memref<128x128xf32, #tpu.memory_space<vmem>>, vector<128x128xf32>
    %cst = arith.constant dense<0.000000e+00> : vector<8x128xf32>
    %5 = tpu.matmul %3, %4, %cst {dimension_numbers = #tpu.dot_dimension_numbers<[1], [0], [0], [1], [0, 0, 1, 1], [], []>} : vector<8x128xf32>, vector<128x128xf32>, vector<8x128xf32> -> vector<8x128xf32>
    %c8_i32 = arith.constant 8 : i32
    %6 = arith.muli %arg1, %c8_i32 : i32
    %7 = tpu.assume_multiple %6, 8 : i32
    %8 = arith.index_cast %7 : i32 to index
    %c0_4 = arith.constant 0 : index
    %9 = vector.load %arg3[%8, %c0_4] : memref<24x1xi32, #tpu.memory_space<vmem>>, vector<8x1xi32>
    %10 = tpu.iota {dimensions = array<i32: 1>} : vector<1x128xi32>
    %c128_i32 = arith.constant 128 : i32
    %11 = arith.muli %arg0, %c128_i32 : i32
    %12 = vector.broadcast %11 : i32 to vector<1x128xi32>
    %13 = arith.addi %10, %12 : vector<1x128xi32>
    %14 = vector.broadcast %9 : vector<8x1xi32> to vector<8x128xi32>
    %15 = vector.broadcast %13 : vector<1x128xi32> to vector<8x128xi32>
    %16 = arith.cmpi eq, %14, %15 : vector<8x128xi32>
    %c0_i32_5 = arith.constant 0 : i32
    %17 = vector.broadcast %c0_i32_5 : i32 to vector<8x1xi32>
    %18 = arith.cmpi sge, %9, %17 : vector<8x1xi32>
    %c16_i32 = arith.constant 16 : i32
    %19 = vector.broadcast %c16_i32 : i32 to vector<1x128xi32>
    %20 = arith.cmpi slt, %13, %19 : vector<1x128xi32>
    %21 = vector.broadcast %18 : vector<8x1xi1> to vector<8x128xi1>
    %22 = vector.broadcast %20 : vector<1x128xi1> to vector<8x128xi1>
    %23 = arith.andi %21, %22 : vector<8x128xi1>
    %cst_6 = arith.constant dense<true> : vector<8x128xi1>
    %24 = arith.xori %16, %cst_6 : vector<8x128xi1>
    %25 = arith.andi %23, %24 : vector<8x128xi1>
    %c0_7 = arith.constant 0 : index
    %c0_8 = arith.constant 0 : index
    %26 = vector.load %arg5[%c0_7, %c0_8] : memref<1x128xf32, #tpu.memory_space<vmem>>, vector<1x128xf32>
    %27 = vector.broadcast %26 : vector<1x128xf32> to vector<8x128xf32>
    %28 = arith.cmpf olt, %5, %27 : vector<8x128xf32>
    %c0_9 = arith.constant 0 : index
    %c0_10 = arith.constant 0 : index
    %29 = vector.load %arg6[%c0_9, %c0_10] : memref<1x128xf32, #tpu.memory_space<vmem>>, vector<1x128xf32>
    %cst_11 = arith.constant 1.000000e+00 : f32
    %30 = vector.shape_cast %29 : vector<1x128xf32> to vector<1x128xf32>
    %31 = vector.broadcast %30 : vector<1x128xf32> to vector<8x128xf32>
    %32 = vector.broadcast %cst_11 : f32 to vector<8x128xf32>
    %33 = arith.select %28, %31, %32 : vector<8x128xi1>, vector<8x128xf32>
    %cst_12 = arith.constant 1.000000e-01 : f32
    %34 = vector.broadcast %cst_12 : f32 to vector<8x128xf32>
    %35 = arith.subf %34, %5 : vector<8x128xf32>
    %cst_13 = arith.constant 1.000000e-01 : f32
    %36 = vector.broadcast %cst_13 : f32 to vector<8x128xf32>
    %37 = arith.addf %5, %36 : vector<8x128xf32>
    %38 = arith.mulf %37, %33 : vector<8x128xf32>
    %39 = arith.select %16, %35, %38 : vector<8x128xi1>, vector<8x128xf32>
    %cst_14 = arith.constant 3.200000e+01 : f32
    %40 = vector.broadcast %cst_14 : f32 to vector<8x128xf32>
    %41 = arith.mulf %40, %39 : vector<8x128xf32>
    %42 = math.exp %41 : vector<8x128xf32>
    %c0_15 = arith.constant 0 : index
    %c0_16 = arith.constant 0 : index
    %43 = vector.load %arg7[%c0_15, %c0_16] : memref<8x128xf32, #tpu.memory_space<vmem>>, vector<8x128xf32>
    %44 = arith.extui %16 : vector<8x128xi1> to vector<8x128xi32>
    %45 = arith.sitofp %44 : vector<8x128xi32> to vector<8x128xf32>
    %46 = arith.addf %43, %45 : vector<8x128xf32>
    %c0_17 = arith.constant 0 : index
    %c0_18 = arith.constant 0 : index
    %47 = vector.load %arg7[%c0_17, %c0_18] : memref<8x128xf32, #tpu.memory_space<vmem>>, vector<8x128xf32>
    tpu.vector_store %arg7[%c0_17, %c0_18], %46 {strides = array<i32>} : memref<8x128xf32, #tpu.memory_space<vmem>>, vector<8x128xf32>,
    %c0_19 = arith.constant 0 : index
    %c0_20 = arith.constant 0 : index
    %48 = vector.load %arg8[%c0_19, %c0_20] : memref<8x128xf32, #tpu.memory_space<vmem>>, vector<8x128xf32>
    %cst_21 = arith.constant 0.000000e+00 : f32
    %49 = vector.broadcast %cst_21 : f32 to vector<8x128xf32>
    %50 = arith.select %25, %33, %49 : vector<8x128xi1>, vector<8x128xf32>
    %51 = arith.addf %48, %50 : vector<8x128xf32>
    %c0_22 = arith.constant 0 : index
    %c0_23 = arith.constant 0 : index
    %52 = vector.load %arg8[%c0_22, %c0_23] : memref<8x128xf32, #tpu.memory_space<vmem>>, vector<8x128xf32>
    tpu.vector_store %arg8[%c0_22, %c0_23], %51 {strides = array<i32>} : memref<8x128xf32, #tpu.memory_space<vmem>>, vector<8x128xf32>,
    %c0_24 = arith.constant 0 : index
    %c0_25 = arith.constant 0 : index
    %53 = vector.load %arg9[%c0_24, %c0_25] : memref<8x128xf32, #tpu.memory_space<vmem>>, vector<8x128xf32>
    %cst_26 = arith.constant 0.000000e+00 : f32
    %54 = vector.broadcast %cst_26 : f32 to vector<8x128xf32>
    %55 = arith.select %16, %42, %54 : vector<8x128xi1>, vector<8x128xf32>
    %56 = arith.addf %53, %55 : vector<8x128xf32>
    %c0_27 = arith.constant 0 : index
    %c0_28 = arith.constant 0 : index
    %57 = vector.load %arg9[%c0_27, %c0_28] : memref<8x128xf32, #tpu.memory_space<vmem>>, vector<8x128xf32>
    tpu.vector_store %arg9[%c0_27, %c0_28], %56 {strides = array<i32>} : memref<8x128xf32, #tpu.memory_space<vmem>>, vector<8x128xf32>,
    %c0_29 = arith.constant 0 : index
    %c0_30 = arith.constant 0 : index
    %58 = vector.load %arg10[%c0_29, %c0_30] : memref<8x128xf32, #tpu.memory_space<vmem>>, vector<8x128xf32>
    %cst_31 = arith.constant 0.000000e+00 : f32
    %59 = vector.broadcast %cst_31 : f32 to vector<8x128xf32>
    %60 = arith.select %25, %42, %59 : vector<8x128xi1>, vector<8x128xf32>
    %61 = arith.addf %58, %60 : vector<8x128xf32>
    %c0_32 = arith.constant 0 : index
    %c0_33 = arith.constant 0 : index
    %62 = vector.load %arg10[%c0_32, %c0_33] : memref<8x128xf32, #tpu.memory_space<vmem>>, vector<8x128xf32>
    tpu.vector_store %arg10[%c0_32, %c0_33], %61 {strides = array<i32>} : memref<8x128xf32, #tpu.memory_space<vmem>>, vector<8x128xf32>,
    return
  }
  func.func @transform_0(%arg0: i32, %arg1: i32) -> (i32, i32) {
    %c0_i32 = arith.constant 0 : i32
    %c0_i32_0 = arith.constant 0 : i32
    return %arg1, %c0_i32 : i32, i32
  }
  func.func @transform_1(%arg0: i32, %arg1: i32) -> (i32, i32) {
    %c0_i32 = arith.constant 0 : i32
    %c0_i32_0 = arith.constant 0 : i32
    %c0_i32_1 = arith.constant 0 : i32
    return %c0_i32, %c0_i32_0 : i32, i32
  }
  func.func @transform_2(%arg0: i32, %arg1: i32) -> (i32, i32) {
    %c0_i32 = arith.constant 0 : i32
    %c0_i32_0 = arith.constant 0 : i32
    return %c0_i32, %arg0 : i32, i32
  }
  func.func @transform_3(%arg0: i32, %arg1: i32) -> (i32, i32) {
    %c0_i32 = arith.constant 0 : i32
    %c0_i32_0 = arith.constant 0 : i32
    return %c0_i32, %arg0 : i32, i32
  }
  func.func @transform_4(%arg0: i32, %arg1: i32) -> (i32, i32) {
    %c0_i32 = arith.constant 0 : i32
    %c0_i32_0 = arith.constant 0 : i32
    return %c0_i32, %arg0 : i32, i32
  }
  func.func @transform_5(%arg0: i32, %arg1: i32) -> (i32, i32) {
    %c0_i32 = arith.constant 0 : i32
    %c0_i32_0 = arith.constant 0 : i32
    return %c0_i32, %arg0 : i32, i32
  }
  func.func @transform_6(%arg0: i32, %arg1: i32) -> (i32, i32) {
    %c0_i32 = arith.constant 0 : i32
    %c0_i32_0 = arith.constant 0 : i32
    return %c0_i32, %arg0 : i32, i32
  }
  func.func @transform_7(%arg0: i32, %arg1: i32) -> (i32, i32) {
    %c0_i32 = arith.constant 0 : i32
    %c0_i32_0 = arith.constant 0 : i32
    return %c0_i32, %arg0 : i32, i32
  }
  func.func @transform_8(%arg0: i32, %arg1: i32) -> (i32, i32) {
    %c0_i32 = arith.constant 0 : i32
    %c0_i32_0 = arith.constant 0 : i32
    return %c0_i32, %arg0 : i32, i32
  }
}

</mosaic_0001>

<llo_original>
// kernel: tpu_custom_call.1
$region0: #{tpu_custom_call.1}
  #allocation0 [shape = 'u32[]', space=smem, size = 0x4, offset = 0x4, fixed_abs, tag = 'smem constant byte address 0x4 - core index']
  #allocation1 [shape = 'u32[144,128]{1,0:T(1,128)}', space=vmem, size = 0x12000, scoped, tag = 'internal scratch']
  %s0 = inlined_call_operand.vmem [shape: f32[24,128], index: 0, kind: input, shape index: {}]
  %s1 = inlined_call_operand.vmem [shape: s32[24,1], index: 1, kind: input, shape index: {}]
  %s2 = inlined_call_operand.hbm [shape: f32[128,128], index: 2, kind: input, shape index: {}]
  %s3 = inlined_call_operand.vmem [shape: f32[1,128], index: 3, kind: input, shape index: {}]
  %s4 = inlined_call_operand.vmem [shape: f32[1,128], index: 4, kind: input, shape index: {}]
  %s5 = inlined_call_operand.hbm [shape: f32[8,128], index: 5, kind: output, shape index: {0}]
  %s6 = inlined_call_operand.hbm [shape: f32[8,128], index: 6, kind: output, shape index: {1}]
  %s7 = inlined_call_operand.hbm [shape: f32[8,128], index: 7, kind: output, shape index: {2}]
  %s8 = inlined_call_operand.hbm [shape: f32[8,128], index: 8, kind: output, shape index: {3}]
  %9 = xla_tuple %s5, %s6, %s7, %s8
  %s10 = sld [smem:[#allocation0]]
  $region85: #{tpu_custom_call.1} parent=0
    _
  %s12 = ssub.s32 1, %s10
  %s13 = scalar_select 0, %s12, %s10
  $region1: #{tpu_custom_call.1} parent=0
    #allocation2 [shape = 'u8[65536]{0}', space=vmem, size = 0x10000, scoped, tag = 'input window, operand 2, single buffered']
    #allocation3 [shape = 's32[2]{0}', space=sflag, size = 0x8, scoped, tag = 'scoped memory for tpu_custom_call.1']
    #allocation4 [shape = 's32[2]{0}', space=sflag, size = 0x8, scoped, tag = 'scoped memory for tpu_custom_call.1']
    #allocation5 [shape = 'u8[4096]{0}', space=vmem, size = 0x1000, scoped, tag = 'output window, operand 0, single buffered']
    #allocation6 [shape = 'u8[4096]{0}', space=vmem, size = 0x1000, scoped, tag = 'output window, operand 1, single buffered']
    #allocation7 [shape = 's32[1]{0}', space=sflag, size = 0x4, scoped, tag = 'scoped memory for tpu_custom_call.1']
    #allocation8 [shape = 'u8[4096]{0}', space=vmem, size = 0x1000, scoped, tag = 'output window, operand 2, single buffered']
    #allocation9 [shape = 'u8[4096]{0}', space=vmem, size = 0x1000, scoped, tag = 'output window, operand 3, single buffered']
    #allocation10 [shape = 's32[1]{0}', space=sflag, size = 0x4, scoped, tag = 'scoped memory for tpu_custom_call.1']
    %14 = vsyncpa [#allocation3], 0
    %15 = vsyncpa [#allocation4], 0
    %16 = vsyncpa [#allocation7], 0
    %17 = vsyncpa [#allocation10], 0
    loop: start=0, step=1, limit=5
    $region2: #{tpu_custom_call.1} parent=1 // loop_pre_header
      _
    $region3: #{tpu_custom_call.1} parent=1 // loop_header
      %s19 = sphi 0, %s23
      %p20 = scmp.ge.s32.totalorder %s19, 5
      %s26 = sphi 0, %s38
      %s27 = sphi 0, %s34
      %s28 = sphi 0, %s26
      %s29 = sphi 0, %s27
      %s30 = sphi 0, %s28
      %s31 = sphi 0, %s29
      %s41 = sphi 0, %s43
      %s44 = sphi 0, %s41
      %s45 = sphi 0, %s44
      %s61 = sphi 0, %s45
      %s65 = sphi 0, %s65
      %s67 = sphi 0, %s65
      %s68 = sphi 0, %s67
      %s82 = sphi 0, %s68
      %s88 = sphi 0, %s90
      %s91 = sphi 0, %s88
      %s92 = sphi 0, %s91
      %s108 = sphi 0, %s92
      %s114 = sphi 0, %s116
      %s117 = sphi 0, %s114
      %s118 = sphi 0, %s117
      %s134 = sphi 0, %s118
      %s140 = sphi 0, %s142
      %s143 = sphi 0, %s140
      %s144 = sphi 0, %s143
      %s160 = sphi 0, %s144
      %s166 = sphi 0, %s168
      %s169 = sphi 0, %s166
      %s170 = sphi 0, %s169
      %s186 = sphi 0, %s170
      %s192 = sphi 0, %s194
      %s195 = sphi 0, %s192
      %s196 = sphi 0, %s195
      %s212 = sphi 0, %s196
      %s218 = sphi 0, %s220
      %s221 = sphi 0, %s218
      %s222 = sphi 0, %s221
      %s238 = sphi 0, %s222
      %s244 = sphi 0, %s246
      %s247 = sphi 0, %s244
      %s248 = sphi 0, %s247
      %s264 = sphi 0, %s248
    $region4: #{tpu_custom_call.1} parent=1 // loop_header_branch
      %22 = sbr.rel (%p20) target = $region8
    $region5: #{tpu_custom_call.1} parent=1 // loop_body
      %s24 = ssub.s32 %s19, 1
      %s25 = ssub.s32 %s19, 2
      %s32 = sadd.s32 1, %s27
      %p33 = scmp.ge.s32.totalorder %s32, 3
      %s34 = scalar_select %p33, 0, %s32
      %s35 = sadd.s32 1, %s26
      %s36 = scalar_select %p33, %s35, %s26
      %p37 = scmp.ge.s32.totalorder %s36, 1
      %s38 = scalar_select %p37, 0, %s36
      %s39 = ssub.s32 %s27, %s34
      %p40 = scmp.eq.s32.totalorder %s39, 0
      %s42 = sadd.s32 %s41, 1
      %s43 = scalar_select %p40, %s41, %s42
      %p46 = pneg %p40
      %p47 = scmp.eq.s32.totalorder %s19, 2
      %p48 = por %p46, %p47
      %p49 = scmp.ne.s32.totalorder %s41, %s44
      %p50 = scmp.eq.s32.totalorder %s19, 0
      %p51 = por %p49, %p50
      %p52 = scmp.ne.s32.totalorder %s41, %s44
      %p53 = scmp.eq.s32.totalorder %s24, 2
      %p54 = por %p52, %p53
      %p55 = scmp.ne.s32.totalorder %s44, %s45
      %p56 = scmp.eq.s32.totalorder %s24, 0
      %p57 = por %p55, %p56
      %p58 = scmp.ne.s32.totalorder %s44, %s45
      %p59 = scmp.eq.s32.totalorder %s25, 2
      %p60 = por %p58, %p59
      %p62 = scmp.ne.s32.totalorder %s45, %s61
      %p63 = scmp.eq.s32.totalorder %s25, 0
      %p64 = por %p62, %p63
      %s66 = sadd.s32 %s65, 1
      %p69 = scmp.eq.s32.totalorder %s19, 2
      %p70 = scmp.ne.s32.totalorder %s65, %s67
      %p71 = scmp.eq.s32.totalorder %s19, 0
      %p72 = por %p70, %p71
      %p73 = scmp.ne.s32.totalorder %s65, %s67
      %p74 = scmp.eq.s32.totalorder %s24, 2
      %p75 = por %p73, %p74
      %p76 = scmp.ne.s32.totalorder %s67, %s68
      %p77 = scmp.eq.s32.totalorder %s24, 0
      %p78 = por %p76, %p77
      %p79 = scmp.ne.s32.totalorder %s67, %s68
      %p80 = scmp.eq.s32.totalorder %s25, 2
      %p81 = por %p79, %p80
      %p83 = scmp.ne.s32.totalorder %s68, %s82
      %p84 = scmp.eq.s32.totalorder %s25, 0
      %p85 = por %p83, %p84
      %s86 = ssub.s32 %s26, %s38
      %p87 = scmp.eq.s32.totalorder %s86, 0
      %s89 = sadd.s32 %s88, 1
      %s90 = scalar_select %p87, %s88, %s89
      %p93 = pneg %p87
      %p94 = scmp.eq.s32.totalorder %s19, 2
      %p95 = por %p93, %p94
      %p96 = scmp.ne.s32.totalorder %s88, %s91
      %p97 = scmp.eq.s32.totalorder %s19, 0
      %p98 = por %p96, %p97
      %p99 = scmp.ne.s32.totalorder %s88, %s91
      %p100 = scmp.eq.s32.totalorder %s24, 2
      %p101 = por %p99, %p100
      %p102 = scmp.ne.s32.totalorder %s91, %s92
      %p103 = scmp.eq.s32.totalorder %s24, 0
      %p104 = por %p102, %p103
      %p105 = scmp.ne.s32.totalorder %s91, %s92
      %p106 = scmp.eq.s32.totalorder %s25, 2
      %p107 = por %p105, %p106
      %p109 = scmp.ne.s32.totalorder %s92, %s108
      %p110 = scmp.eq.s32.totalorder %s25, 0
      %p111 = por %p109, %p110
      %s112 = ssub.s32 %s26, %s38
      %p113 = scmp.eq.s32.totalorder %s112, 0
      %s115 = sadd.s32 %s114, 1
      %s116 = scalar_select %p113, %s114, %s115
      %p119 = pneg %p113
      %p120 = scmp.eq.s32.totalorder %s19, 2
      %p121 = por %p119, %p120
      %p122 = scmp.ne.s32.totalorder %s114, %s117
      %p123 = scmp.eq.s32.totalorder %s19, 0
      %p124 = por %p122, %p123
      %p125 = scmp.ne.s32.totalorder %s114, %s117
      %p126 = scmp.eq.s32.totalorder %s24, 2
      %p127 = por %p125, %p126
      %p128 = scmp.ne.s32.totalorder %s117, %s118
      %p129 = scmp.eq.s32.totalorder %s24, 0
      %p130 = por %p128, %p129
      %p131 = scmp.ne.s32.totalorder %s117, %s118
      %p132 = scmp.eq.s32.totalorder %s25, 2
      %p133 = por %p131, %p132
      %p135 = scmp.ne.s32.totalorder %s118, %s134
      %p136 = scmp.eq.s32.totalorder %s25, 0
      %p137 = por %p135, %p136
      %s138 = ssub.s32 %s26, %s38
      %p139 = scmp.eq.s32.totalorder %s138, 0
      %s141 = sadd.s32 %s140, 1
      %s142 = scalar_select %p139, %s140, %s141
      %p145 = pneg %p139
      %p146 = scmp.eq.s32.totalorder %s19, 2
      %p147 = por %p145, %p146
      %p148 = scmp.ne.s32.totalorder %s140, %s143
      %p149 = scmp.eq.s32.totalorder %s19, 0
      %p150 = por %p148, %p149
      %p151 = scmp.ne.s32.totalorder %s140, %s143
      %p152 = scmp.eq.s32.totalorder %s24, 2
      %p153 = por %p151, %p152
      %p154 = scmp.ne.s32.totalorder %s143, %s144
      %p155 = scmp.eq.s32.totalorder %s24, 0
      %p156 = por %p154, %p155
      %p157 = scmp.ne.s32.totalorder %s143, %s144
      %p158 = scmp.eq.s32.totalorder %s25, 2
      %p159 = por %p157, %p158
      %p161 = scmp.ne.s32.totalorder %s144, %s160
      %p162 = scmp.eq.s32.totalorder %s25, 0
      %p163 = por %p161, %p162
      %s164 = ssub.s32 %s26, %s38
      %p165 = scmp.eq.s32.totalorder %s164, 0
      %s167 = sadd.s32 %s166, 1
      %s168 = scalar_select %p165, %s166, %s167
      %p171 = pneg %p165
      %p172 = scmp.eq.s32.totalorder %s19, 2
      %p173 = por %p171, %p172
      %p174 = scmp.ne.s32.totalorder %s166, %s169
      %p175 = scmp.eq.s32.totalorder %s19, 0
      %p176 = por %p174, %p175
      %p177 = scmp.ne.s32.totalorder %s166, %s169
      %p178 = scmp.eq.s32.totalorder %s24, 2
      %p179 = por %p177, %p178
      %p180 = scmp.ne.s32.totalorder %s169, %s170
      %p181 = scmp.eq.s32.totalorder %s24, 0
      %p182 = por %p180, %p181
      %p183 = scmp.ne.s32.totalorder %s169, %s170
      %p184 = scmp.eq.s32.totalorder %s25, 2
      %p185 = por %p183, %p184
      %p187 = scmp.ne.s32.totalorder %s170, %s186
      %p188 = scmp.eq.s32.totalorder %s25, 0
      %p189 = por %p187, %p188
      %s190 = ssub.s32 %s26, %s38
      %p191 = scmp.eq.s32.totalorder %s190, 0
      %s193 = sadd.s32 %s192, 1
      %s194 = scalar_select %p191, %s192, %s193
      %p197 = pneg %p191
      %p198 = scmp.eq.s32.totalorder %s19, 2
      %p199 = por %p197, %p198
      %p200 = scmp.ne.s32.totalorder %s192, %s195
      %p201 = scmp.eq.s32.totalorder %s19, 0
      %p202 = por %p200, %p201
      %p203 = scmp.ne.s32.totalorder %s192, %s195
      %p204 = scmp.eq.s32.totalorder %s24, 2
      %p205 = por %p203, %p204
      %p206 = scmp.ne.s32.totalorder %s195, %s196
      %p207 = scmp.eq.s32.totalorder %s24, 0
      %p208 = por %p206, %p207
      %p209 = scmp.ne.s32.totalorder %s195, %s196
      %p210 = scmp.eq.s32.totalorder %s25, 2
      %p211 = por %p209, %p210
      %p213 = scmp.ne.s32.totalorder %s196, %s212
      %p214 = scmp.eq.s32.totalorder %s25, 0
      %p215 = por %p213, %p214
      %s216 = ssub.s32 %s26, %s38
      %p217 = scmp.eq.s32.totalorder %s216, 0
      %s219 = sadd.s32 %s218, 1
      %s220 = scalar_select %p217, %s218, %s219
      %p223 = pneg %p217
      %p224 = scmp.eq.s32.totalorder %s19, 2
      %p225 = por %p223, %p224
      %p226 = scmp.ne.s32.totalorder %s218, %s221
      %p227 = scmp.eq.s32.totalorder %s19, 0
      %p228 = por %p226, %p227
      %p229 = scmp.ne.s32.totalorder %s218, %s221
      %p230 = scmp.eq.s32.totalorder %s24, 2
      %p231 = por %p229, %p230
      %p232 = scmp.ne.s32.totalorder %s221, %s222
      %p233 = scmp.eq.s32.totalorder %s24, 0
      %p234 = por %p232, %p233
      %p235 = scmp.ne.s32.totalorder %s221, %s222
      %p236 = scmp.eq.s32.totalorder %s25, 2
      %p237 = por %p235, %p236
      %p239 = scmp.ne.s32.totalorder %s222, %s238
      %p240 = scmp.eq.s32.totalorder %s25, 0
      %p241 = por %p239, %p240
      %s242 = ssub.s32 %s26, %s38
      %p243 = scmp.eq.s32.totalorder %s242, 0
      %s245 = sadd.s32 %s244, 1
      %s246 = scalar_select %p243, %s244, %s245
      %p249 = pneg %p243
      %p250 = scmp.eq.s32.totalorder %s19, 2
      %p251 = por %p249, %p250
      %p252 = scmp.ne.s32.totalorder %s244, %s247
      %p253 = scmp.eq.s32.totalorder %s19, 0
      %p254 = por %p252, %p253
      %p255 = scmp.ne.s32.totalorder %s244, %s247
      %p256 = scmp.eq.s32.totalorder %s24, 2
      %p257 = por %p255, %p256
      %p258 = scmp.ne.s32.totalorder %s247, %s248
      %p259 = scmp.eq.s32.totalorder %s24, 0
      %p260 = por %p258, %p259
      %p261 = scmp.ne.s32.totalorder %s247, %s248
      %p262 = scmp.eq.s32.totalorder %s25, 2
      %p263 = por %p261, %p262
      %p265 = scmp.ne.s32.totalorder %s248, %s264
      %p266 = scmp.eq.s32.totalorder %s25, 0
      %p267 = por %p265, %p266
      %p268 = scmp.le.s32.totalorder 1, %s19
      %p269 = scmp.lt.s32.totalorder %s19, 4
      %p270 = pnand %p268, %p269
      %p271 = pneg %p270
      // Predicated region
      $region9: #{tpu_custom_call.1} parent=5 // pred_check
        _
      $region10: #{tpu_custom_call.1} parent=5 // pred_check_branch
        %273 = sbr.rel (%p270) target = $region12
      $region11: #{tpu_custom_call.1} parent=5 // pred_region
        %s274 = ssub.s32 %s19, 1
        // Predicated region
        $region13: #{tpu_custom_call.1} parent=11 // pred_check
          %p275 = pneg %p78
        $region14: #{tpu_custom_call.1} parent=11 // pred_check_branch
          %277 = sbr.rel (%p275) target = $region16
        $region15: #{tpu_custom_call.1} parent=11 // pred_region
          _
        $region16: #{tpu_custom_call.1} parent=11 // pred_fallthru
          _
        // Predicated region
        $region17: #{tpu_custom_call.1} parent=11 // pred_check
          %p278 = pneg %p104
        $region18: #{tpu_custom_call.1} parent=11 // pred_check_branch
          %280 = sbr.rel (%p278) target = $region20
        $region19: #{tpu_custom_call.1} parent=11 // pred_region
          %s282 = ssub.s32 2048, 2048
          %283 = vsyncadd [#allocation3], %s282
          %s284 = smul.addr %s28, 128
          %s285 = scalar_lea.hbm %s2, %s284
          %s286 = sshll.u32 [#allocation2], 4
          %s287 = int_to_ptr.vmem [resolvable:$true] %s286
          %292 = dma.hbm_to_vmem [thread:$0]  %s285, 2048, %s287, [#allocation3], 128, 128, 8
        $region20: #{tpu_custom_call.1} parent=11 // pred_fallthru
          _
        // Predicated region
        $region21: #{tpu_custom_call.1} parent=11 // pred_check
          %p293 = pneg %p130
        $region22: #{tpu_custom_call.1} parent=11 // pred_check_branch
          %295 = sbr.rel (%p293) target = $region24
        $region23: #{tpu_custom_call.1} parent=11 // pred_region
          %p296 = scmp.lt.s32.totalorder %s28, 0
          %s297 = scalar_select %p296, %s28, 0
          %s298 = scalar_lea.vmem %s3, %s297
        $region24: #{tpu_custom_call.1} parent=11 // pred_fallthru
          _
        // Predicated region
        $region25: #{tpu_custom_call.1} parent=11 // pred_check
          %p299 = pneg %p156
        $region26: #{tpu_custom_call.1} parent=11 // pred_check_branch
          %301 = sbr.rel (%p299) target = $region28
        $region27: #{tpu_custom_call.1} parent=11 // pred_region
          %p302 = scmp.lt.s32.totalorder %s28, 0
          %s303 = scalar_select %p302, %s28, 0
          %s304 = scalar_lea.vmem %s4, %s303
        $region28: #{tpu_custom_call.1} parent=11 // pred_fallthru
          _
      $region12: #{tpu_custom_call.1} parent=5 // pred_fallthru
        _
      %p305 = scmp.lt.s32.totalorder %s19, 3
      // Predicated region
      $region29: #{tpu_custom_call.1} parent=5 // pred_check
        %p306 = pneg %p305
      $region30: #{tpu_custom_call.1} parent=5 // pred_check_branch
        %308 = sbr.rel (%p306) target = $region32
      $region31: #{tpu_custom_call.1} parent=5 // pred_region
        // Predicated region
        $region33: #{tpu_custom_call.1} parent=31 // pred_check
          %p309 = pneg %p51
        $region34: #{tpu_custom_call.1} parent=31 // pred_check_branch
          %311 = sbr.rel (%p309) target = $region36
        $region35: #{tpu_custom_call.1} parent=31 // pred_region
          %p312 = scmp.lt.s32.totalorder %s27, 2
          %s313 = scalar_select %p312, %s27, 2
          %s314 = smul.addr %s313, 8
          %s315 = scalar_lea.vmem %s0, %s314
        $region36: #{tpu_custom_call.1} parent=31 // pred_fallthru
          _
      $region32: #{tpu_custom_call.1} parent=5 // pred_fallthru
        _
      %p316 = scmp.le.s32.totalorder 1, %s19
      %p317 = scmp.lt.s32.totalorder %s19, 4
      %p318 = pnand %p316, %p317
      %p319 = pneg %p318
      // Predicated region
      $region37: #{tpu_custom_call.1} parent=5 // pred_check
        _
      $region38: #{tpu_custom_call.1} parent=5 // pred_check_branch
        %321 = sbr.rel (%p318) target = $region40
      $region39: #{tpu_custom_call.1} parent=5 // pred_region
        %s322 = ssub.s32 %s19, 1
        // Predicated region
        $region41: #{tpu_custom_call.1} parent=39 // pred_check
          %p323 = pneg %p104
        $region42: #{tpu_custom_call.1} parent=39 // pred_check_branch
          %325 = sbr.rel (%p323) target = $region44
        $region43: #{tpu_custom_call.1} parent=39 // pred_region
          %326 = dma.done [#allocation3], 2048
        $region44: #{tpu_custom_call.1} parent=39 // pred_fallthru
          _
        %p327 = scmp.lt.s32.totalorder %s29, 2
        %s328 = scalar_select %p327, %s29, 2
        %s329 = smul.addr %s328, 8
        %s330 = scalar_lea.vmem %s0, %s329
        %p331 = pneg %p57
        %p332 = pneg %p54
        %p333 = pneg %p78
        %p334 = pneg %p75
        %p335 = pneg %p104
        %p336 = pneg %p101
        %p337 = scmp.lt.s32.totalorder %s28, 0
        %s338 = scalar_select %p337, %s28, 0
        %s339 = scalar_lea.vmem %s3, %s338
        %p340 = pneg %p130
        %p341 = pneg %p127
        %p342 = scmp.lt.s32.totalorder %s28, 0
        %s343 = scalar_select %p342, %s28, 0
        %s344 = scalar_lea.vmem %s4, %s343
        %p345 = pneg %p156
        %p346 = pneg %p153
        %p347 = pneg %p182
        %p348 = pneg %p179
        %p349 = pneg %p208
        %p350 = pneg %p205
        %p351 = pneg %p234
        %p352 = pneg %p231
        %p353 = pneg %p260
        %p354 = pneg %p257
        %p355 = scmp.lt.s32.totalorder %s29, 2
        %s356 = scalar_select %p355, %s29, 2
        %s357 = smul.addr %s356, 8
        %s358 = scalar_lea.vmem %s0, %s357
        %p359 = scmp.lt.s32.totalorder %s28, 0
        %s360 = scalar_select %p359, %s28, 0
        %s361 = scalar_lea.vmem %s3, %s360
        %p362 = scmp.lt.s32.totalorder %s28, 0
        %s363 = scalar_select %p362, %s28, 0
        %s364 = scalar_lea.vmem %s4, %s363
        %p365 = scmp.eq.s32.totalorder %s29, 0
        // Predicated region
        $region45: #{tpu_custom_call.1} parent=39 // pred_check
          %p366 = pneg %p365
        $region46: #{tpu_custom_call.1} parent=39 // pred_check_branch
          %368 = sbr.rel (%p366) target = $region48
        $region47: #{tpu_custom_call.1} parent=39 // pred_region
          %369 = vst [vmem:[#allocation5] sm:$0xff] 0.0
          %370 = vst [vmem:[#allocation6] sm:$0xff] 0.0
          %371 = vst [vmem:[#allocation8] sm:$0xff] 0.0
          %372 = vst [vmem:[#allocation9] sm:$0xff] 0.0
        $region48: #{tpu_custom_call.1} parent=39 // pred_fallthru
          _
        %v373 = vld [vmem:[%s358] sm:$0xff]
        %v374 = vld [vmem:[#allocation2] sm:$0xff]
        %v375 = vld [vmem:[#allocation2 + $0x8] sm:$0xff]
        %v376 = vld [vmem:[#allocation2 + $0x10] sm:$0xff]
        %v377 = vld [vmem:[#allocation2 + $0x18] sm:$0xff]
        %v378 = vld [vmem:[#allocation2 + $0x20] sm:$0xff]
        %v379 = vld [vmem:[#allocation2 + $0x28] sm:$0xff]
        %v380 = vld [vmem:[#allocation2 + $0x30] sm:$0xff]
        %v381 = vld [vmem:[#allocation2 + $0x38] sm:$0xff]
        %v382 = vld [vmem:[#allocation2 + $0x40] sm:$0xff]
        %v383 = vld [vmem:[#allocation2 + $0x48] sm:$0xff]
        %v384 = vld [vmem:[#allocation2 + $0x50] sm:$0xff]
        %v385 = vld [vmem:[#allocation2 + $0x58] sm:$0xff]
        %v386 = vld [vmem:[#allocation2 + $0x60] sm:$0xff]
        %v387 = vld [vmem:[#allocation2 + $0x68] sm:$0xff]
        %v388 = vld [vmem:[#allocation2 + $0x70] sm:$0xff]
        %v389 = vld [vmem:[#allocation2 + $0x78] sm:$0xff]
        %390 = vmatprep.subr.mxu0 0.0
        %391 = vmatpush1.msra.mxu0 %v374
        %392 = vmatprep.subr.mxu0 0.0
        %393 = vmatpush1.msra.mxu0 %v375
        %394 = vmatprep.subr.mxu0 0.0
        %395 = vmatpush1.msra.mxu0 %v376
        %396 = vmatprep.subr.mxu0 0.0
        %397 = vmatpush1.msra.mxu0 %v377
        %398 = vmatprep.subr.mxu0 0.0
        %399 = vmatpush1.msra.mxu0 %v378
        %400 = vmatprep.subr.mxu0 0.0
        %401 = vmatpush1.msra.mxu0 %v379
        %402 = vmatprep.subr.mxu0 0.0
        %403 = vmatpush1.msra.mxu0 %v380
        %404 = vmatprep.subr.mxu0 0.0
        %405 = vmatpush1.msra.mxu0 %v381
        %406 = vmatprep.subr.mxu0 0.0
        %407 = vmatpush1.msra.mxu0 %v382
        %408 = vmatprep.subr.mxu0 0.0
        %409 = vmatpush1.msra.mxu0 %v383
        %410 = vmatprep.subr.mxu0 0.0
        %411 = vmatpush1.msra.mxu0 %v384
        %412 = vmatprep.subr.mxu0 0.0
        %413 = vmatpush1.msra.mxu0 %v385
        %414 = vmatprep.subr.mxu0 0.0
        %415 = vmatpush1.msra.mxu0 %v386
        %416 = vmatprep.subr.mxu0 0.0
        %417 = vmatpush1.msra.mxu0 %v387
        %418 = vmatprep.subr.mxu0 0.0
        %419 = vmatpush1.msra.mxu0 %v388
        %420 = vmatprep.subr.mxu0 0.0
        %421 = vmatpush1.msra.mxu0 %v389
        %422 = vmatprep.subr.mxu0 0.0
        %423 = vmatpush1.msra.mxu0 0.0
        %424 = vmatprep.subr.mxu0 0.0
        %425 = vmatpush1.msra.mxu0 0.0
        %426 = vmatprep.subr.mxu0 0.0
        %427 = vmatpush1.msra.mxu0 0.0
        %428 = vmatprep.subr.mxu0 0.0
        %429 = vmatpush1.msra.mxu0 0.0
        %430 = vmatprep.subr.mxu0 0.0
        %431 = vmatpush1.msra.mxu0 0.0
        %432 = vmatprep.subr.mxu0 0.0
        %433 = vmatpush1.msra.mxu0 0.0
        %434 = vmatprep.subr.mxu0 0.0
        %435 = vmatpush1.msra.mxu0 0.0
        %436 = vmatprep.subr.mxu0 0.0
        %437 = vmatpush1.msra.mxu0 0.0
        %438 = vmatprep.subr.mxu0 0.0
        %439 = vmatpush1.msra.mxu0 0.0
        %440 = vmatprep.subr.mxu0 0.0
        %441 = vmatpush1.msra.mxu0 0.0
        %442 = vmatprep.subr.mxu0 0.0
        %443 = vmatpush1.msra.mxu0 0.0
        %444 = vmatprep.subr.mxu0 0.0
        %445 = vmatpush1.msra.mxu0 0.0
        %446 = vmatprep.subr.mxu0 0.0
        %447 = vmatpush1.msra.mxu0 0.0
        %448 = vmatprep.subr.mxu0 0.0
        %449 = vmatpush1.msra.mxu0 0.0
        %450 = vmatprep.subr.mxu0 0.0
        %451 = vmatpush1.msra.mxu0 0.0
        %452 = vmatprep.subr.mxu0 0.0
        %453 = vmatpush1.msra.mxu0 0.0
        %454 = vmatprep.mubr.f32.mxu0 0.0
        %455 = vmatmul.mubr.f32.gmra.mrb[0].mxu0 %v373
        %v456 = vpop.f32.mrb[0].mxu0
        %v457 = vadd.f32 0.0, %v456
        %v458 = vpop.f32.mrb[0].mxu0
        %459 = vdwg.mxu0
        %s460 = smul.u32 %s29, 8
        %s461 = scalar_lea.vmem %s1, %s460
        %v462 = vld [vmem:[%s461] sm:$0xff]
        %v463 = vlaneseq
        %v464 = vand.u32 %v463, 127
        %s465 = smul.u32 %s28, 128
        %v466 = vstv %s465
        %v467 = vadd.s32 %v464, %v466
        %468 = vset.pattern.permute.xlu0 0
        %469 = vperm.xlu0 %468, %v462
        %v470 = vpop.permute.xlu0 %469
        %vm471 = vcmp.eq.s32.totalorder %v470, %v467
        %vm472 = vcmp.ge.s32.totalorder %v462, 0
        %vm473 = vcmp.lt.s32.totalorder %v467, 16
        %v474 = vsel %vm472, 1, 0
        %475 = vset.pattern.permute.xlu0 0
        %476 = vperm.xlu0 %475, %v474
        %v477 = vpop.permute.xlu0 %476
        %vm478 = vcmp.eq.s32.totalorder %v477, 1
        %v479 = vsel %vm473, 1, 0
        %vm480 = vcmp.eq.s32.totalorder %v479, 1
        %vm481 = vmand %vm478, %vm480
        %vm482 = vmxor %vm471, 1
        %vm483 = vmand %vm481, %vm482
        %v484 = vld [vmem:[%s361] sm:$0x1]
        %v486 = vlaneseq
        %v487 = vshrl.u32 %v486, 7
        %v488 = vsub.s32 0, %v487
        %v489 = vrot.slane %v484, %v488
        %vm491 = vcmp.lt.f32.partialorder %v457, %v489
        %v492 = vld [vmem:[%s364] sm:$0x1]
        %v494 = vlaneseq
        %v495 = vshrl.u32 %v494, 7
        %v496 = vsub.s32 0, %v495
        %v497 = vrot.slane %v492, %v496
        %v499 = vsel %vm491, %v497, 1.0
        %v500 = vsub.f32 0.1, %v457
        %v501 = vadd.f32 %v457, 0.1
        %v502 = vmul.f32 %v501, %v499
        %v503 = vsel %vm471, %v500, %v502
        %v504 = vmul.f32 %v503, 32.0
        %v505 = vmul.f32 %v504, 1.442695
        %v506 = vpow.pop %v505
        %v507 = vld [vmem:[#allocation5] sm:$0xff]
        %v508 = vsel %vm471, 1, 0
        %v509 = vcvt.s32.f32 %v508
        %v510 = vadd.f32 %v507, %v509
        %511 = vst [vmem:[#allocation5] sm:$0xff] %v510
        %v512 = vld [vmem:[#allocation6] sm:$0xff]
        %v513 = vsel %vm483, %v499, 0.0
        %v514 = vadd.f32 %v512, %v513
        %515 = vst [vmem:[#allocation6] sm:$0xff] %v514
        %v516 = vld [vmem:[#allocation8] sm:$0xff]
        %v517 = vsel %vm471, %v506, 0.0
        %v518 = vadd.f32 %v516, %v517
        %519 = vst [vmem:[#allocation8] sm:$0xff] %v518
        %v520 = vld [vmem:[#allocation9] sm:$0xff]
        %v521 = vsel %vm483, %v506, 0.0
        %v522 = vadd.f32 %v520, %v521
        %523 = vst [vmem:[#allocation9] sm:$0xff] %v522
        // Predicated region
        $region49: #{tpu_custom_call.1} parent=39 // pred_check
          %p524 = pneg %p179
        $region50: #{tpu_custom_call.1} parent=39 // pred_check_branch
          %526 = sbr.rel (%p524) target = $region52
        $region51: #{tpu_custom_call.1} parent=39 // pred_region
          %s528 = ssub.s32 128, 128
          %529 = vsyncadd [#allocation4], %s528
          %s530 = smul.addr %s28, 128
          %s531 = scalar_lea.hbm %s5, %s530
          %s533 = sshll.u32 [#allocation5], 4
          %s534 = int_to_ptr.vmem [resolvable:$true] %s533
          %536 = dma.vmem_to_hbm [thread:$0]  %s534, 128, %s531, [#allocation4]
        $region52: #{tpu_custom_call.1} parent=39 // pred_fallthru
          _
        // Predicated region
        $region53: #{tpu_custom_call.1} parent=39 // pred_check
          %p537 = pneg %p205
        $region54: #{tpu_custom_call.1} parent=39 // pred_check_branch
          %539 = sbr.rel (%p537) target = $region56
        $region55: #{tpu_custom_call.1} parent=39 // pred_region
          %s541 = ssub.s32 128, 128
          %542 = vsyncadd [#allocation7], %s541
          %s543 = smul.addr %s28, 128
          %s544 = scalar_lea.hbm %s6, %s543
          %s546 = sshll.u32 [#allocation6], 4
          %s547 = int_to_ptr.vmem [resolvable:$true] %s546
          %549 = dma.vmem_to_hbm [thread:$0]  %s547, 128, %s544, [#allocation7]
        $region56: #{tpu_custom_call.1} parent=39 // pred_fallthru
          _
        // Predicated region
        $region57: #{tpu_custom_call.1} parent=39 // pred_check
          %p550 = pneg %p231
        $region58: #{tpu_custom_call.1} parent=39 // pred_check_branch
          %552 = sbr.rel (%p550) target = $region60
        $region59: #{tpu_custom_call.1} parent=39 // pred_region
          %s554 = ssub.s32 128, 128
          %555 = vsyncadd [#allocation7], %s554
          %s556 = smul.addr %s28, 128
          %s557 = scalar_lea.hbm %s7, %s556
          %s559 = sshll.u32 [#allocation8], 4
          %s560 = int_to_ptr.vmem [resolvable:$true] %s559
          %562 = dma.vmem_to_hbm [thread:$0]  %s560, 128, %s557, [#allocation7]
        $region60: #{tpu_custom_call.1} parent=39 // pred_fallthru
          _
        // Predicated region
        $region61: #{tpu_custom_call.1} parent=39 // pred_check
          %p563 = pneg %p257
        $region62: #{tpu_custom_call.1} parent=39 // pred_check_branch
          %565 = sbr.rel (%p563) target = $region64
        $region63: #{tpu_custom_call.1} parent=39 // pred_region
          %s567 = ssub.s32 128, 128
          %568 = vsyncadd [#allocation10], %s567
          %s569 = smul.addr %s28, 128
          %s570 = scalar_lea.hbm %s8, %s569
          %s572 = sshll.u32 [#allocation9], 4
          %s573 = int_to_ptr.vmem [resolvable:$true] %s572
          %575 = dma.vmem_to_hbm [thread:$0]  %s573, 128, %s570, [#allocation10]
        $region64: #{tpu_custom_call.1} parent=39 // pred_fallthru
          _
        // Predicated region
        $region65: #{tpu_custom_call.1} parent=39 // pred_check
          %p576 = pneg %p179
        $region66: #{tpu_custom_call.1} parent=39 // pred_check_branch
          %578 = sbr.rel (%p576) target = $region68
        $region67: #{tpu_custom_call.1} parent=39 // pred_region
          %579 = dma.done [#allocation4], 128
        $region68: #{tpu_custom_call.1} parent=39 // pred_fallthru
          _
        // Predicated region
        $region69: #{tpu_custom_call.1} parent=39 // pred_check
          %p580 = pneg %p205
        $region70: #{tpu_custom_call.1} parent=39 // pred_check_branch
          %582 = sbr.rel (%p580) target = $region72
        $region71: #{tpu_custom_call.1} parent=39 // pred_region
          %583 = dma.done [#allocation7], 128
        $region72: #{tpu_custom_call.1} parent=39 // pred_fallthru
          _
        // Predicated region
        $region73: #{tpu_custom_call.1} parent=39 // pred_check
          %p584 = pneg %p231
        $region74: #{tpu_custom_call.1} parent=39 // pred_check_branch
          %586 = sbr.rel (%p584) target = $region76
        $region75: #{tpu_custom_call.1} parent=39 // pred_region
          %587 = dma.done [#allocation7], 128
        $region76: #{tpu_custom_call.1} parent=39 // pred_fallthru
          _
        // Predicated region
        $region77: #{tpu_custom_call.1} parent=39 // pred_check
          %p588 = pneg %p257
        $region78: #{tpu_custom_call.1} parent=39 // pred_check_branch
          %590 = sbr.rel (%p588) target = $region80
        $region79: #{tpu_custom_call.1} parent=39 // pred_region
          %591 = dma.done [#allocation10], 128
        $region80: #{tpu_custom_call.1} parent=39 // pred_fallthru
          _
      $region40: #{tpu_custom_call.1} parent=5 // pred_fallthru
        _
      %p592 = scmp.le.s32.totalorder 2, %s19
      // Predicated region
      $region81: #{tpu_custom_call.1} parent=5 // pred_check
        %p593 = pneg %p592
      $region82: #{tpu_custom_call.1} parent=5 // pred_check_branch
        %595 = sbr.rel (%p593) target = $region84
      $region83: #{tpu_custom_call.1} parent=5 // pred_region
        %s596 = ssub.s32 %s19, 2
      $region84: #{tpu_custom_call.1} parent=5 // pred_fallthru
        _
    $region6: #{tpu_custom_call.1} parent=1 // loop_footer
      %s23 = sadd.s32 1, %s19
    $region7: #{tpu_custom_call.1} parent=1 // loop_footer_branch
      %18 = sbr.rel target = $region3
    $region8: #{tpu_custom_call.1} parent=1 // loop_exit
      _
    %597 = vsyncpa [#allocation3], 1
    %s598 = scalar_lea.sflag [#allocation3], 1
    %599 = vsyncpa %s598, 1
    %600 = vsyncpa [#allocation4], 1
    %s601 = scalar_lea.sflag [#allocation4], 1
    %602 = vsyncpa %s601, 1
    %603 = vsyncpa [#allocation7], 1
    %604 = vsyncpa [#allocation10], 1

</llo_original>
